<compile_context>
chip_gen: v5e
topology: v5e:2x2
jax: 0.10.0
libtpu: 0.0.40
codegen_flags: <defaults>
</compile_context>

<pallas_src>
import math

import jax
import jax.numpy as jnp
from jax.experimental import pallas as pl
from jax.experimental.pallas import tpu as pltpu


def _round_up(a: int, b: int) -> int:
    return (a + b - 1) // b * b


# ----------------------------- Pallas kernel ------------------------------

def mlps_kernel(x_ref, w1t_ref, b1_ref, w2t_ref, b2_ref, o_ref):
    """Fused 2-layer MLP on one row-tile.

    x_ref   : (TM, IN_pad)   bf16
    w1t_ref : (IN_pad, OUT)  bf16  -- W1 transposed + zero-padded host-side
    b1_ref  : (1, OUT)       f32
    w2t_ref : (OUT, OUT)     bf16  -- W2 transposed host-side
    b2_ref  : (1, OUT)       f32
    o_ref   : (TM, OUT)      f32
    """
    # TODO(synk): nn.Dropout is treated as identity (deterministic eval mode).
    h = jnp.dot(x_ref[...], w1t_ref[...], preferred_element_type=jnp.float32)
    h = jnp.tanh(h + b1_ref[...])
    o = jnp.dot(h.astype(w2t_ref.dtype), w2t_ref[...],
                preferred_element_type=jnp.float32)
    o = jnp.tanh(o + b2_ref[...])
    o_ref[...] = o.astype(o_ref.dtype)


# --------------------------- parameter prep --------------------------------
# Done ONCE at init time so the per-call path never pays for transposes/casts.

def prepare_mlps_params(w1, b1, w2, b2):
    """w1: (OUT, IN); b1: (OUT,); w2: (OUT, OUT); b2: (OUT,)."""
    OUT, IN = w1.shape
    IN_pad = _round_up(IN, 128)
    w1t = jnp.pad(jnp.asarray(w1, jnp.float32).T,
                  ((0, IN_pad - IN), (0, 0))).astype(jnp.bfloat16)   # (IN_pad, OUT)
    w2t = jnp.asarray(w2, jnp.float32).T.astype(jnp.bfloat16)        # (OUT, OUT)
    b1r = jnp.asarray(b1, jnp.float32).reshape(1, OUT)
    b2r = jnp.asarray(b2, jnp.float32).reshape(1, OUT)
    return w1t, b1r, w2t, b2r


# ------------------------------ wrapper ------------------------------------

def mlps_forward(x, w1t, b1r, w2t, b2r, *, block_rows=512):
    """x: (N, IN); pre-laid-out params from prepare_mlps_params."""
    N, IN = x.shape
    IN_pad, OUT = w1t.shape

    # Row tile: big (amortize per-step overhead, approach HBM roofline) but
    # multiple of 8 and capped so the grid keeps >= 2 steps (v7x megacore).
    tm = min(_round_up(block_rows, 8), _round_up(pl.cdiv(N, 2), 8))
    tm = max(8, tm)
    n_pad = _round_up(N, tm)
    grid = (n_pad // tm,)

    # Zero-pad rows to a multiple of tm and cols to IN_pad (lane-dense K=128),
    # cast activations to bf16 (f32 accumulation happens inside the kernel).
    x_p = jnp.pad(jnp.asarray(x, jnp.float32),
                  ((0, n_pad - N), (0, IN_pad - IN))).astype(jnp.bfloat16)

    # VMEM budget: double-buffered x/out tiles + single-buffered weights/biases.
    buf_bytes = (2 * tm * IN_pad * 2            # x tile, bf16, 2 buffers
                 + 2 * tm * OUT * 4             # out tile, f32, 2 buffers
                 + IN_pad * OUT * 2             # W1^T, bf16, 1 buffer
                 + OUT * OUT * 2                # W2^T, bf16, 1 buffer
                 + 2 * OUT * 4)                 # biases, f32
    vmem_limit = int(min(64 << 20, max(16 << 20, 2 * buf_bytes + (1 << 20))))

    cost = pl.CostEstimate(
        flops=int(2 * n_pad * (IN_pad * OUT + OUT * OUT)),
        transcendentals=int(2 * n_pad * OUT),
        bytes_accessed=int(n_pad * IN_pad * 2 + n_pad * OUT * 4
                           + IN_pad * OUT * 2 + OUT * OUT * 2 + 2 * OUT * 4),
    )

    const_buf = pl.Buffered(buffer_count=1)     # index never changes -> 1 buffer

    out = pl.pallas_call(
        mlps_kernel,
        grid=grid,
        in_specs=[
            pl.BlockSpec((tm, IN_pad), lambda i: (i, 0)),               # x row tile
            pl.BlockSpec((IN_pad, OUT), lambda i: (0, 0),
                         pipeline_mode=const_buf),                      # W1^T
            pl.BlockSpec((1, OUT), lambda i: (0, 0),
                         pipeline_mode=const_buf),                      # b1
            pl.BlockSpec((OUT, OUT), lambda i: (0, 0),
                         pipeline_mode=const_buf),                      # W2^T
            pl.BlockSpec((1, OUT), lambda i: (0, 0),
                         pipeline_mode=const_buf),                      # b2
        ],
        out_specs=pl.BlockSpec((tm, OUT), lambda i: (i, 0)),
        out_shape=jax.ShapeDtypeStruct((n_pad, OUT), jnp.float32),
        compiler_params=pltpu.CompilerParams(
            dimension_semantics=("parallel",),
            vmem_limit_bytes=vmem_limit,
        ),
        cost_estimate=cost,
    )(x_p, w1t, b1r, w2t, b2r)

    return out[:N]


# ------------------------------ reference ----------------------------------

def mlps_reference(x, w1, b1, w2, b2):
    h = jnp.tanh(x @ w1.T + b1[None, :])
    return jnp.tanh(h @ w2.T + b2[None, :])


# -------------------------------- main --------------------------------------

if __name__ == "__main__":
    # Small shapes consistent with how CapeGCN uses MLPs (input = 3*emb concat);
    # out_size chosen lane-dense (128) so stores are unmasked full vst.
    N, IN, OUT = 256, 96, 128

    key = jax.random.PRNGKey(0)
    kx, k1, kb1, k2, kb2 = jax.random.split(key, 5)

    # PyTorch nn.Linear default init: U(-1/sqrt(fan_in), 1/sqrt(fan_in))
    s1 = 1.0 / math.sqrt(IN)
    s2 = 1.0 / math.sqrt(OUT)
    x  = jax.random.normal(kx, (N, IN), jnp.float32)
    w1 = jax.random.uniform(k1,  (OUT, IN),  jnp.float32, -s1, s1)
    b1 = jax.random.uniform(kb1, (OUT,),     jnp.float32, -s1, s1)
    w2 = jax.random.uniform(k2,  (OUT, OUT), jnp.float32, -s2, s2)
    b2 = jax.random.uniform(kb2, (OUT,),     jnp.float32, -s2, s2)

    # One-time parameter layout (transpose / pad / cast) -- not in the hot path.
    params = prepare_mlps_params(w1, b1, w2, b2)

    fwd = jax.jit(mlps_forward)
    out = fwd(x, *params)
    jax.block_until_ready(out)

    ref = mlps_reference(x, w1, b1, w2, b2)
    assert out.shape == (N, OUT)
    max_err = float(jnp.max(jnp.abs(out - ref)))
    # bf16 MXU inputs vs f32 reference -> loosened tolerance (tanh outputs |y|<=1).
    assert max_err < 2e-2, max_err
    print("KERNEL_OK")
</pallas_src>

<mosaic_0001>
module attributes {stable_mosaic.version = 11 : i64} {
  func.func @mlps_kernel(%arg0: i32, %arg1: memref<128x128xbf16, #tpu.memory_space<vmem>>, %arg2: memref<128x128xbf16, #tpu.memory_space<vmem>>, %arg3: memref<1x128xf32, #tpu.memory_space<vmem>>, %arg4: memref<128x128xbf16, #tpu.memory_space<vmem>>, %arg5: memref<1x128xf32, #tpu.memory_space<vmem>>, %arg6: memref<128x128xf32, #tpu.memory_space<vmem>>) attributes {dimension_semantics = [#tpu.dimension_semantics<parallel>], iteration_bounds = array<i64: 2>, scalar_prefetch = 0 : i64, scratch_operands = 0 : i64, tpu.core_type = #tpu.core_type<tc>, window_params = [{transform_indices = @transform_0, window_bounds = array<i64: 128, 128>}, {pipeline_mode = #tpu.pipeline_mode<synchronous>, transform_indices = @transform_1, window_bounds = array<i64: 128, 128>}, {pipeline_mode = #tpu.pipeline_mode<synchronous>, transform_indices = @transform_2, window_bounds = array<i64: 1, 128>}, {pipeline_mode = #tpu.pipeline_mode<synchronous>, transform_indices = @transform_3, window_bounds = array<i64: 128, 128>}, {pipeline_mode = #tpu.pipeline_mode<synchronous>, transform_indices = @transform_4, window_bounds = array<i64: 1, 128>}, {transform_indices = @transform_5, window_bounds = array<i64: 128, 128>}]} {
    %c0 = arith.constant 0 : index
    %c0_0 = arith.constant 0 : index
    %0 = vector.load %arg1[%c0, %c0_0] : memref<128x128xbf16, #tpu.memory_space<vmem>>, vector<128x128xbf16>
    %c0_1 = arith.constant 0 : index
    %c0_2 = arith.constant 0 : index
    %1 = vector.load %arg2[%c0_1, %c0_2] : memref<128x128xbf16, #tpu.memory_space<vmem>>, vector<128x128xbf16>
    %cst = arith.constant dense<0.000000e+00> : vector<128x128xf32>
    %2 = tpu.matmul %0, %1, %cst {dimension_numbers = #tpu.dot_dimension_numbers<[1], [0], [0], [1], [0, 0, 1, 1], [], []>} : vector<128x128xbf16>, vector<128x128xbf16>, vector<128x128xf32> -> vector<128x128xf32>
    %c0_3 = arith.constant 0 : index
    %c0_4 = arith.constant 0 : index
    %3 = vector.load %arg3[%c0_3, %c0_4] : memref<1x128xf32, #tpu.memory_space<vmem>>, vector<1x128xf32>
    %4 = vector.broadcast %3 : vector<1x128xf32> to vector<128x128xf32>
    %5 = arith.addf %2, %4 : vector<128x128xf32>
    %6 = math.tanh %5 : vector<128x128xf32>
    %7 = arith.truncf %6 : vector<128x128xf32> to vector<128x128xbf16>
    %c0_5 = arith.constant 0 : index
    %c0_6 = arith.constant 0 : index
    %8 = vector.load %arg4[%c0_5, %c0_6] : memref<128x128xbf16, #tpu.memory_space<vmem>>, vector<128x128xbf16>
    %cst_7 = arith.constant dense<0.000000e+00> : vector<128x128xf32>
    %9 = tpu.matmul %7, %8, %cst_7 {dimension_numbers = #tpu.dot_dimension_numbers<[1], [0], [0], [1], [0, 0, 1, 1], [], []>} : vector<128x128xbf16>, vector<128x128xbf16>, vector<128x128xf32> -> vector<128x128xf32>
    %c0_8 = arith.constant 0 : index
    %c0_9 = arith.constant 0 : index
    %10 = vector.load %arg5[%c0_8, %c0_9] : memref<1x128xf32, #tpu.memory_space<vmem>>, vector<1x128xf32>
    %11 = vector.broadcast %10 : vector<1x128xf32> to vector<128x128xf32>
    %12 = arith.addf %9, %11 : vector<128x128xf32>
    %13 = math.tanh %12 : vector<128x128xf32>
    %c0_10 = arith.constant 0 : index
    %c0_11 = arith.constant 0 : index
    %14 = vector.load %arg6[%c0_10, %c0_11] : memref<128x128xf32, #tpu.memory_space<vmem>>, vector<128x128xf32>
    tpu.vector_store %arg6[%c0_10, %c0_11], %13 {strides = array<i32>} : memref<128x128xf32, #tpu.memory_space<vmem>>, vector<128x128xf32>,
    return
  }
  func.func @transform_0(%arg0: i32) -> (i32, i32) {
    %c0_i32 = arith.constant 0 : i32
    %c0_i32_0 = arith.constant 0 : i32
    return %arg0, %c0_i32 : i32, i32
  }
  func.func @transform_1(%arg0: i32) -> (i32, i32) {
    %c0_i32 = arith.constant 0 : i32
    %c0_i32_0 = arith.constant 0 : i32
    %c0_i32_1 = arith.constant 0 : i32
    return %c0_i32, %c0_i32_0 : i32, i32
  }
  func.func @transform_2(%arg0: i32) -> (i32, i32) {
    %c0_i32 = arith.constant 0 : i32
    %c0_i32_0 = arith.constant 0 : i32
    %c0_i32_1 = arith.constant 0 : i32
    return %c0_i32, %c0_i32_0 : i32, i32
  }
  func.func @transform_3(%arg0: i32) -> (i32, i32) {
    %c0_i32 = arith.constant 0 : i32
    %c0_i32_0 = arith.constant 0 : i32
    %c0_i32_1 = arith.constant 0 : i32
    return %c0_i32, %c0_i32_0 : i32, i32
  }
  func.func @transform_4(%arg0: i32) -> (i32, i32) {
    %c0_i32 = arith.constant 0 : i32
    %c0_i32_0 = arith.constant 0 : i32
    %c0_i32_1 = arith.constant 0 : i32
    return %c0_i32, %c0_i32_0 : i32, i32
  }
  func.func @transform_5(%arg0: i32) -> (i32, i32) {
    %c0_i32 = arith.constant 0 : i32
    %c0_i32_0 = arith.constant 0 : i32
    return %arg0, %c0_i32 : i32, i32
  }
}

</mosaic_0001>

<llo_original>
// kernel: mlps_forward.1
$region0: #{mlps_forward.1}
  #allocation0 [shape = 'u32[]', space=smem, size = 0x4, offset = 0x4, fixed_abs, tag = 'smem constant byte address 0x4 - core index']
  #allocation1 [shape = 'u32[72,128]{1,0:T(1,128)}', space=vmem, size = 0x9000, scoped, tag = 'internal scratch']
  %s0 = inlined_call_operand.vmem [shape: bf16[256,128], index: 0, kind: input, shape index: {}]
  %s1 = inlined_call_operand.vmem [shape: bf16[128,128], index: 1, kind: input, shape index: {}]
  %s2 = inlined_call_operand.vmem [shape: f32[1,128], index: 2, kind: input, shape index: {}]
  %s3 = inlined_call_operand.vmem [shape: bf16[128,128], index: 3, kind: input, shape index: {}]
  %s4 = inlined_call_operand.vmem [shape: f32[1,128], index: 4, kind: input, shape index: {}]
  %s5 = inlined_call_operand.hbm [shape: f32[256,128], index: 5, kind: output, shape index: {}]
  %s6 = sld [smem:[#allocation0]]
  $region53: #{mlps_forward.1} parent=0
    _
  %s8 = ssub.s32 1, %s6
  %s9 = scalar_select 0, %s8, %s6
  $region1: #{mlps_forward.1} parent=0
    #allocation2 [shape = 'u8[131072]{0}', space=vmem, size = 0x20000, scoped, tag = 'output window, operand 0']
    #allocation3 [shape = 's32[2]{0}', space=sflag, size = 0x8, scoped, tag = 'scoped memory for mlps_forward.1']
    %10 = vsyncpa [#allocation3], 0
    %s11 = scalar_lea.sflag [#allocation3], 1
    %12 = vsyncpa %s11, 0
    loop: start=0, step=1, limit=4
    $region2: #{mlps_forward.1} parent=1 // loop_pre_header
      _
    $region3: #{mlps_forward.1} parent=1 // loop_header
      %s14 = sphi 0, %s18
      %p15 = scmp.ge.s32.totalorder %s14, 4
      %s24 = sphi 0, %s26
      %s27 = sphi 0, %s24
      %s28 = sphi 0, %s27
      %s44 = sphi 0, %s28
      %s48 = sphi 0, %s48
      %s50 = sphi 0, %s48
      %s51 = sphi 0, %s50
      %s65 = sphi 0, %s51
      %s69 = sphi 0, %s69
      %s71 = sphi 0, %s69
      %s72 = sphi 0, %s71
      %s86 = sphi 0, %s72
      %s90 = sphi 0, %s90
      %s92 = sphi 0, %s90
      %s93 = sphi 0, %s92
      %s107 = sphi 0, %s93
      %s111 = sphi 0, %s111
      %s113 = sphi 0, %s111
      %s114 = sphi 0, %s113
      %s128 = sphi 0, %s114
      %s134 = sphi 0, %s136
      %s137 = sphi 0, %s134
      %s138 = sphi 0, %s137
      %s154 = sphi 0, %s138
    $region4: #{mlps_forward.1} parent=1 // loop_header_branch
      %17 = sbr.rel (%p15) target = $region8
    $region5: #{mlps_forward.1} parent=1 // loop_body
      %s19 = ssub.s32 %s14, 1
      %s20 = ssub.s32 %s14, 2
      %s21 = sadd.s32 %s14, 1
      %s22 = ssub.s32 %s14, %s21
      %p23 = scmp.eq.s32.totalorder %s22, 0
      %s25 = sadd.s32 %s24, 1
      %s26 = scalar_select %p23, %s24, %s25
      %p29 = pneg %p23
      %p30 = scmp.eq.s32.totalorder %s14, 1
      %p31 = por %p29, %p30
      %p32 = scmp.ne.s32.totalorder %s24, %s27
      %p33 = scmp.eq.s32.totalorder %s14, 0
      %p34 = por %p32, %p33
      %p35 = scmp.ne.s32.totalorder %s24, %s27
      %p36 = scmp.eq.s32.totalorder %s19, 1
      %p37 = por %p35, %p36
      %p38 = scmp.ne.s32.totalorder %s27, %s28
      %p39 = scmp.eq.s32.totalorder %s19, 0
      %p40 = por %p38, %p39
      %p41 = scmp.ne.s32.totalorder %s27, %s28
      %p42 = scmp.eq.s32.totalorder %s20, 1
      %p43 = por %p41, %p42
      %p45 = scmp.ne.s32.totalorder %s28, %s44
      %p46 = scmp.eq.s32.totalorder %s20, 0
      %p47 = por %p45, %p46
      %s49 = sadd.s32 %s48, 1
      %p52 = scmp.eq.s32.totalorder %s14, 1
      %p53 = scmp.ne.s32.totalorder %s48, %s50
      %p54 = scmp.eq.s32.totalorder %s14, 0
      %p55 = por %p53, %p54
      %p56 = scmp.ne.s32.totalorder %s48, %s50
      %p57 = scmp.eq.s32.totalorder %s19, 1
      %p58 = por %p56, %p57
      %p59 = scmp.ne.s32.totalorder %s50, %s51
      %p60 = scmp.eq.s32.totalorder %s19, 0
      %p61 = por %p59, %p60
      %p62 = scmp.ne.s32.totalorder %s50, %s51
      %p63 = scmp.eq.s32.totalorder %s20, 1
      %p64 = por %p62, %p63
      %p66 = scmp.ne.s32.totalorder %s51, %s65
      %p67 = scmp.eq.s32.totalorder %s20, 0
      %p68 = por %p66, %p67
      %s70 = sadd.s32 %s69, 1
      %p73 = scmp.eq.s32.totalorder %s14, 1
      %p74 = scmp.ne.s32.totalorder %s69, %s71
      %p75 = scmp.eq.s32.totalorder %s14, 0
      %p76 = por %p74, %p75
      %p77 = scmp.ne.s32.totalorder %s69, %s71
      %p78 = scmp.eq.s32.totalorder %s19, 1
      %p79 = por %p77, %p78
      %p80 = scmp.ne.s32.totalorder %s71, %s72
      %p81 = scmp.eq.s32.totalorder %s19, 0
      %p82 = por %p80, %p81
      %p83 = scmp.ne.s32.totalorder %s71, %s72
      %p84 = scmp.eq.s32.totalorder %s20, 1
      %p85 = por %p83, %p84
      %p87 = scmp.ne.s32.totalorder %s72, %s86
      %p88 = scmp.eq.s32.totalorder %s20, 0
      %p89 = por %p87, %p88
      %s91 = sadd.s32 %s90, 1
      %p94 = scmp.eq.s32.totalorder %s14, 1
      %p95 = scmp.ne.s32.totalorder %s90, %s92
      %p96 = scmp.eq.s32.totalorder %s14, 0
      %p97 = por %p95, %p96
      %p98 = scmp.ne.s32.totalorder %s90, %s92
      %p99 = scmp.eq.s32.totalorder %s19, 1
      %p100 = por %p98, %p99
      %p101 = scmp.ne.s32.totalorder %s92, %s93
      %p102 = scmp.eq.s32.totalorder %s19, 0
      %p103 = por %p101, %p102
      %p104 = scmp.ne.s32.totalorder %s92, %s93
      %p105 = scmp.eq.s32.totalorder %s20, 1
      %p106 = por %p104, %p105
      %p108 = scmp.ne.s32.totalorder %s93, %s107
      %p109 = scmp.eq.s32.totalorder %s20, 0
      %p110 = por %p108, %p109
      %s112 = sadd.s32 %s111, 1
      %p115 = scmp.eq.s32.totalorder %s14, 1
      %p116 = scmp.ne.s32.totalorder %s111, %s113
      %p117 = scmp.eq.s32.totalorder %s14, 0
      %p118 = por %p116, %p117
      %p119 = scmp.ne.s32.totalorder %s111, %s113
      %p120 = scmp.eq.s32.totalorder %s19, 1
      %p121 = por %p119, %p120
      %p122 = scmp.ne.s32.totalorder %s113, %s114
      %p123 = scmp.eq.s32.totalorder %s19, 0
      %p124 = por %p122, %p123
      %p125 = scmp.ne.s32.totalorder %s113, %s114
      %p126 = scmp.eq.s32.totalorder %s20, 1
      %p127 = por %p125, %p126
      %p129 = scmp.ne.s32.totalorder %s114, %s128
      %p130 = scmp.eq.s32.totalorder %s20, 0
      %p131 = por %p129, %p130
      %s132 = ssub.s32 %s14, %s21
      %p133 = scmp.eq.s32.totalorder %s132, 0
      %s135 = sadd.s32 %s134, 1
      %s136 = scalar_select %p133, %s134, %s135
      %p139 = pneg %p133
      %p140 = scmp.eq.s32.totalorder %s14, 1
      %p141 = por %p139, %p140
      %p142 = scmp.ne.s32.totalorder %s134, %s137
      %p143 = scmp.eq.s32.totalorder %s14, 0
      %p144 = por %p142, %p143
      %p145 = scmp.ne.s32.totalorder %s134, %s137
      %p146 = scmp.eq.s32.totalorder %s19, 1
      %p147 = por %p145, %p146
      %p148 = scmp.ne.s32.totalorder %s137, %s138
      %p149 = scmp.eq.s32.totalorder %s19, 0
      %p150 = por %p148, %p149
      %p151 = scmp.ne.s32.totalorder %s137, %s138
      %p152 = scmp.eq.s32.totalorder %s20, 1
      %p153 = por %p151, %p152
      %p155 = scmp.ne.s32.totalorder %s138, %s154
      %p156 = scmp.eq.s32.totalorder %s20, 0
      %p157 = por %p155, %p156
      %p158 = scmp.le.s32.totalorder 1, %s14
      %p159 = scmp.lt.s32.totalorder %s14, 3
      %p160 = pnand %p158, %p159
      %p161 = pneg %p160
      // Predicated region
      $region9: #{mlps_forward.1} parent=5 // pred_check
        _
      $region10: #{mlps_forward.1} parent=5 // pred_check_branch
        %163 = sbr.rel (%p160) target = $region12
      $region11: #{mlps_forward.1} parent=5 // pred_region
        %s164 = ssub.s32 %s14, 1
        // Predicated region
        $region13: #{mlps_forward.1} parent=11 // pred_check
          %p165 = pneg %p61
        $region14: #{mlps_forward.1} parent=11 // pred_check_branch
          %167 = sbr.rel (%p165) target = $region16
        $region15: #{mlps_forward.1} parent=11 // pred_region
          _
        $region16: #{mlps_forward.1} parent=11 // pred_fallthru
          _
        // Predicated region
        $region17: #{mlps_forward.1} parent=11 // pred_check
          %p168 = pneg %p82
        $region18: #{mlps_forward.1} parent=11 // pred_check_branch
          %170 = sbr.rel (%p168) target = $region20
        $region19: #{mlps_forward.1} parent=11 // pred_region
          _
        $region20: #{mlps_forward.1} parent=11 // pred_fallthru
          _
        // Predicated region
        $region21: #{mlps_forward.1} parent=11 // pred_check
          %p171 = pneg %p103
        $region22: #{mlps_forward.1} parent=11 // pred_check_branch
          %173 = sbr.rel (%p171) target = $region24
        $region23: #{mlps_forward.1} parent=11 // pred_region
          _
        $region24: #{mlps_forward.1} parent=11 // pred_fallthru
          _
        // Predicated region
        $region25: #{mlps_forward.1} parent=11 // pred_check
          %p174 = pneg %p124
        $region26: #{mlps_forward.1} parent=11 // pred_check_branch
          %176 = sbr.rel (%p174) target = $region28
        $region27: #{mlps_forward.1} parent=11 // pred_region
          _
        $region28: #{mlps_forward.1} parent=11 // pred_fallthru
          _
      $region12: #{mlps_forward.1} parent=5 // pred_fallthru
        _
      %p177 = scmp.lt.s32.totalorder %s14, 2
      // Predicated region
      $region29: #{mlps_forward.1} parent=5 // pred_check
        %p178 = pneg %p177
      $region30: #{mlps_forward.1} parent=5 // pred_check_branch
        %180 = sbr.rel (%p178) target = $region32
      $region31: #{mlps_forward.1} parent=5 // pred_region
        // Predicated region
        $region33: #{mlps_forward.1} parent=31 // pred_check
          %p181 = pneg %p34
        $region34: #{mlps_forward.1} parent=31 // pred_check_branch
          %183 = sbr.rel (%p181) target = $region36
        $region35: #{mlps_forward.1} parent=31 // pred_region
          %s184 = smul.u32 16, %s14
          %p185 = scmp.lt.s32.totalorder %s184, 31
          %s186 = scalar_select %p185, %s184, 31
          %s187 = smul.addr %s186, 4
          %s188 = scalar_lea.vmem %s0, %s187
          %s189 = smul.u32 16, %s14
        $region36: #{mlps_forward.1} parent=31 // pred_fallthru
          _
      $region32: #{mlps_forward.1} parent=5 // pred_fallthru
        _
      %p190 = scmp.le.s32.totalorder 1, %s14
      %p191 = scmp.lt.s32.totalorder %s14, 3
      %p192 = pnand %p190, %p191
      %p193 = pneg %p192
      // Predicated region
      $region37: #{mlps_forward.1} parent=5 // pred_check
        _
      $region38: #{mlps_forward.1} parent=5 // pred_check_branch
        %195 = sbr.rel (%p192) target = $region40
      $region39: #{mlps_forward.1} parent=5 // pred_region
        %s196 = ssub.s32 %s14, 1
        %s197 = smul.u32 16, %s19
        %p198 = scmp.lt.s32.totalorder %s197, 31
        %s199 = scalar_select %p198, %s197, 31
        %s200 = smul.addr %s199, 4
        %s201 = scalar_lea.vmem %s0, %s200
        %p202 = pneg %p40
        %p203 = pneg %p37
        %p204 = pneg %p61
        %p205 = pneg %p58
        %p206 = pneg %p82
        %p207 = pneg %p79
        %p208 = pneg %p103
        %p209 = pneg %p100
        %p210 = pneg %p124
        %p211 = pneg %p121
        %p212 = pneg %p150
        %p213 = pneg %p147
        %s214 = sand.u32 %s137, 1
        %s215 = scalar_lea.sflag [#allocation3], %s214
        %s216 = sand.u32 %s137, 1
        %s217 = smul.addr %s216, 128
        %s218 = scalar_lea.vmem [#allocation2], %s217
        %s219 = smul.u32 16, %s19
        %p220 = scmp.lt.s32.totalorder %s219, 31
        %s221 = scalar_select %p220, %s219, 31
        %s222 = smul.addr %s221, 4
        %s223 = scalar_lea.vmem %s0, %s222
        %s224 = smul.u32 16, %s19
        %s225 = smul.u32 16, %s19
        %v226 = vld [vmem:[%s223] sm:$0xf]
        %v227 = vld [vmem:[%s223 + $0x4] sm:$0xf]
        %v228 = vld [vmem:[%s223 + $0x8] sm:$0xf]
        %v229 = vld [vmem:[%s223 + $0xc] sm:$0xf]
        %v230 = vld [vmem:[%s223 + $0x10] sm:$0xf]
        %v231 = vld [vmem:[%s223 + $0x14] sm:$0xf]
        %v232 = vld [vmem:[%s223 + $0x18] sm:$0xf]
        %v233 = vld [vmem:[%s223 + $0x1c] sm:$0xf]
        %v234 = vld [vmem:[%s223 + $0x20] sm:$0xf]
        %v235 = vld [vmem:[%s223 + $0x24] sm:$0xf]
        %v236 = vld [vmem:[%s223 + $0x28] sm:$0xf]
        %v237 = vld [vmem:[%s223 + $0x2c] sm:$0xf]
        %v238 = vld [vmem:[%s223 + $0x30] sm:$0xf]
        %v239 = vld [vmem:[%s223 + $0x34] sm:$0xf]
        %v240 = vld [vmem:[%s223 + $0x38] sm:$0xf]
        %v241 = vld [vmem:[%s223 + $0x3c] sm:$0xf]
        %v242 = vld [vmem:[%s1] sm:$0xf]
        %v243 = vld [vmem:[%s1 + $0x4] sm:$0xf]
        %v244 = vld [vmem:[%s1 + $0x8] sm:$0xf]
        %v245 = vld [vmem:[%s1 + $0xc] sm:$0xf]
        %v246 = vld [vmem:[%s1 + $0x10] sm:$0xf]
        %v247 = vld [vmem:[%s1 + $0x14] sm:$0xf]
        %v248 = vld [vmem:[%s1 + $0x18] sm:$0xf]
        %v249 = vld [vmem:[%s1 + $0x1c] sm:$0xf]
        %v250 = vld [vmem:[%s1 + $0x20] sm:$0xf]
        %v251 = vld [vmem:[%s1 + $0x24] sm:$0xf]
        %v252 = vld [vmem:[%s1 + $0x28] sm:$0xf]
        %v253 = vld [vmem:[%s1 + $0x2c] sm:$0xf]
        %v254 = vld [vmem:[%s1 + $0x30] sm:$0xf]
        %v255 = vld [vmem:[%s1 + $0x34] sm:$0xf]
        %v256 = vld [vmem:[%s1 + $0x38] sm:$0xf]
        %v257 = vld [vmem:[%s1 + $0x3c] sm:$0xf]
        %v258 = vld [vmem:[%s2] sm:$0x1]
        %v260 = vperm.slane %v258, 0
        %v278 = vunpack.c.l.b16 %v226
        %v279 = vunpack.c.l.b16 %v227
        %v280 = vunpack.c.l.b16 %v228
        %v281 = vunpack.c.l.b16 %v229
        %v282 = vunpack.c.l.b16 %v230
        %v283 = vunpack.c.l.b16 %v231
        %v284 = vunpack.c.l.b16 %v232
        %v285 = vunpack.c.l.b16 %v233
        %v286 = vunpack.c.l.b16 %v234
        %v287 = vunpack.c.l.b16 %v235
        %v288 = vunpack.c.l.b16 %v236
        %v289 = vunpack.c.l.b16 %v237
        %v290 = vunpack.c.l.b16 %v238
        %v291 = vunpack.c.l.b16 %v239
        %v292 = vunpack.c.l.b16 %v240
        %v293 = vunpack.c.l.b16 %v241
        %v294 = vpack.c.b16 %v279, %v278
        %v295 = vpack.c.b16 %v281, %v280
        %v296 = vpack.c.b16 %v283, %v282
        %v297 = vpack.c.b16 %v285, %v284
        %v298 = vpack.c.b16 %v287, %v286
        %v299 = vpack.c.b16 %v289, %v288
        %v300 = vpack.c.b16 %v291, %v290
        %v301 = vpack.c.b16 %v293, %v292
        %v326 = vunpack.c.l.b16 %v242
        %v327 = vunpack.c.l.b16 %v243
        %v328 = vunpack.c.l.b16 %v244
        %v329 = vunpack.c.l.b16 %v245
        %v330 = vunpack.c.l.b16 %v246
        %v331 = vunpack.c.l.b16 %v247
        %v332 = vunpack.c.l.b16 %v248
        %v333 = vunpack.c.l.b16 %v249
        %v334 = vunpack.c.l.b16 %v250
        %v335 = vunpack.c.l.b16 %v251
        %v336 = vunpack.c.l.b16 %v252
        %v337 = vunpack.c.l.b16 %v253
        %v338 = vunpack.c.l.b16 %v254
        %v339 = vunpack.c.l.b16 %v255
        %v340 = vunpack.c.l.b16 %v256
        %v341 = vunpack.c.l.b16 %v257
        %v342 = vpack.c.b16 %v327, %v326
        %v343 = vpack.c.b16 %v329, %v328
        %v344 = vpack.c.b16 %v331, %v330
        %v345 = vpack.c.b16 %v333, %v332
        %v346 = vpack.c.b16 %v335, %v334
        %v347 = vpack.c.b16 %v337, %v336
        %v348 = vpack.c.b16 %v339, %v338
        %v349 = vpack.c.b16 %v341, %v340
        %358 = vmatpush.bf16.msra.mxu0 %v349
        %359 = vmatpush.bf16.msra.mxu0 %v348
        %360 = vmatpush.bf16.msra.mxu0 %v347
        %361 = vmatpush.bf16.msra.mxu0 %v346
        %362 = vmatpush.bf16.msra.mxu0 %v345
        %363 = vmatpush.bf16.msra.mxu0 %v344
        %364 = vmatpush.bf16.msra.mxu0 %v343
        %365 = vmatpush.bf16.msra.mxu0 %v342
        %366 = vmatmul.bf16.gmra.mxu0 %v294
        %v367 = vpop.f32.mrf.mxu0
        %v368 = vadd.f32 %v260, %v367
        %v369 = vpop.f32.mrf.mxu0
        %v370 = vadd.f32 %v260, %v369
        %371 = vmatmul.bf16.gmra.mxu0 %v295
        %v372 = vpop.f32.mrf.mxu0
        %v373 = vadd.f32 %v260, %v372
        %v374 = vpop.f32.mrf.mxu0
        %v375 = vadd.f32 %v260, %v374
        %376 = vmatmul.bf16.gmra.mxu0 %v296
        %v377 = vpop.f32.mrf.mxu0
        %v378 = vadd.f32 %v260, %v377
        %v379 = vpop.f32.mrf.mxu0
        %v380 = vadd.f32 %v260, %v379
        %381 = vmatmul.bf16.gmra.mxu0 %v297
        %v382 = vpop.f32.mrf.mxu0
        %v383 = vadd.f32 %v260, %v382
        %v384 = vpop.f32.mrf.mxu0
        %v385 = vadd.f32 %v260, %v384
        %386 = vmatmul.bf16.gmra.mxu0 %v298
        %v387 = vpop.f32.mrf.mxu0
        %v388 = vadd.f32 %v260, %v387
        %v389 = vpop.f32.mrf.mxu0
        %v390 = vadd.f32 %v260, %v389
        %391 = vmatmul.bf16.gmra.mxu0 %v299
        %v392 = vpop.f32.mrf.mxu0
        %v393 = vadd.f32 %v260, %v392
        %v394 = vpop.f32.mrf.mxu0
        %v395 = vadd.f32 %v260, %v394
        %396 = vmatmul.bf16.gmra.mxu0 %v300
        %v397 = vpop.f32.mrf.mxu0
        %v398 = vadd.f32 %v260, %v397
        %v399 = vpop.f32.mrf.mxu0
        %v400 = vadd.f32 %v260, %v399
        %401 = vmatmul.bf16.gmra.mxu0 %v301
        %v402 = vpop.f32.mrf.mxu0
        %v403 = vadd.f32 %v260, %v402
        %v404 = vpop.f32.mrf.mxu0
        %v405 = vadd.f32 %v260, %v404
        %406 = vdwg.mxu0
        %v407 = vtanh.pop %v368
        %v408 = vtanh.pop %v370
        %v409 = vtanh.pop %v373
        %v410 = vtanh.pop %v375
        %v411 = vtanh.pop %v378
        %v412 = vtanh.pop %v380
        %v413 = vtanh.pop %v383
        %v414 = vtanh.pop %v385
        %v415 = vtanh.pop %v388
        %v416 = vtanh.pop %v390
        %v417 = vtanh.pop %v393
        %v418 = vtanh.pop %v395
        %v419 = vtanh.pop %v398
        %v420 = vtanh.pop %v400
        %v421 = vtanh.pop %v403
        %v422 = vtanh.pop %v405
        %v423 = vpack.c.bf16 %v408, %v407
        %v424 = vpack.c.bf16 %v410, %v409
        %v425 = vpack.c.bf16 %v412, %v411
        %v426 = vpack.c.bf16 %v414, %v413
        %v427 = vpack.c.bf16 %v416, %v415
        %v428 = vpack.c.bf16 %v418, %v417
        %v429 = vpack.c.bf16 %v420, %v419
        %v430 = vpack.c.bf16 %v422, %v421
        %v431 = vld [vmem:[%s3] sm:$0xf]
        %v432 = vld [vmem:[%s3 + $0x4] sm:$0xf]
        %v433 = vld [vmem:[%s3 + $0x8] sm:$0xf]
        %v434 = vld [vmem:[%s3 + $0xc] sm:$0xf]
        %v435 = vld [vmem:[%s3 + $0x10] sm:$0xf]
        %v436 = vld [vmem:[%s3 + $0x14] sm:$0xf]
        %v437 = vld [vmem:[%s3 + $0x18] sm:$0xf]
        %v438 = vld [vmem:[%s3 + $0x1c] sm:$0xf]
        %v439 = vld [vmem:[%s3 + $0x20] sm:$0xf]
        %v440 = vld [vmem:[%s3 + $0x24] sm:$0xf]
        %v441 = vld [vmem:[%s3 + $0x28] sm:$0xf]
        %v442 = vld [vmem:[%s3 + $0x2c] sm:$0xf]
        %v443 = vld [vmem:[%s3 + $0x30] sm:$0xf]
        %v444 = vld [vmem:[%s3 + $0x34] sm:$0xf]
        %v445 = vld [vmem:[%s3 + $0x38] sm:$0xf]
        %v446 = vld [vmem:[%s3 + $0x3c] sm:$0xf]
        %v447 = vld [vmem:[%s4] sm:$0x1]
        %v449 = vperm.slane %v447, 0
        %v467 = vunpack.c.l.b16 %v431
        %v468 = vunpack.c.l.b16 %v432
        %v469 = vunpack.c.l.b16 %v433
        %v470 = vunpack.c.l.b16 %v434
        %v471 = vunpack.c.l.b16 %v435
        %v472 = vunpack.c.l.b16 %v436
        %v473 = vunpack.c.l.b16 %v437
        %v474 = vunpack.c.l.b16 %v438
        %v475 = vunpack.c.l.b16 %v439
        %v476 = vunpack.c.l.b16 %v440
        %v477 = vunpack.c.l.b16 %v441
        %v478 = vunpack.c.l.b16 %v442
        %v479 = vunpack.c.l.b16 %v443
        %v480 = vunpack.c.l.b16 %v444
        %v481 = vunpack.c.l.b16 %v445
        %v482 = vunpack.c.l.b16 %v446
        %v483 = vpack.c.b16 %v468, %v467
        %v484 = vpack.c.b16 %v470, %v469
        %v485 = vpack.c.b16 %v472, %v471
        %v486 = vpack.c.b16 %v474, %v473
        %v487 = vpack.c.b16 %v476, %v475
        %v488 = vpack.c.b16 %v478, %v477
        %v489 = vpack.c.b16 %v480, %v479
        %v490 = vpack.c.b16 %v482, %v481
        %499 = vmatpush.bf16.msra.mxu0 %v490
        %500 = vmatpush.bf16.msra.mxu0 %v489
        %501 = vmatpush.bf16.msra.mxu0 %v488
        %502 = vmatpush.bf16.msra.mxu0 %v487
        %503 = vmatpush.bf16.msra.mxu0 %v486
        %504 = vmatpush.bf16.msra.mxu0 %v485
        %505 = vmatpush.bf16.msra.mxu0 %v484
        %506 = vmatpush.bf16.msra.mxu0 %v483
        %507 = vmatmul.bf16.gmra.mxu0 %v423
        %v508 = vpop.f32.mrf.mxu0
        %v509 = vadd.f32 %v449, %v508
        %v510 = vpop.f32.mrf.mxu0
        %v511 = vadd.f32 %v449, %v510
        %512 = vmatmul.bf16.gmra.mxu0 %v424
        %v513 = vpop.f32.mrf.mxu0
        %v514 = vadd.f32 %v449, %v513
        %v515 = vpop.f32.mrf.mxu0
        %v516 = vadd.f32 %v449, %v515
        %517 = vmatmul.bf16.gmra.mxu0 %v425
        %v518 = vpop.f32.mrf.mxu0
        %v519 = vadd.f32 %v449, %v518
        %v520 = vpop.f32.mrf.mxu0
        %v521 = vadd.f32 %v449, %v520
        %522 = vmatmul.bf16.gmra.mxu0 %v426
        %v523 = vpop.f32.mrf.mxu0
        %v524 = vadd.f32 %v449, %v523
        %v525 = vpop.f32.mrf.mxu0
        %v526 = vadd.f32 %v449, %v525
        %527 = vmatmul.bf16.gmra.mxu0 %v427
        %v528 = vpop.f32.mrf.mxu0
        %v529 = vadd.f32 %v449, %v528
        %v530 = vpop.f32.mrf.mxu0
        %v531 = vadd.f32 %v449, %v530
        %532 = vmatmul.bf16.gmra.mxu0 %v428
        %v533 = vpop.f32.mrf.mxu0
        %v534 = vadd.f32 %v449, %v533
        %v535 = vpop.f32.mrf.mxu0
        %v536 = vadd.f32 %v449, %v535
        %537 = vmatmul.bf16.gmra.mxu0 %v429
        %v538 = vpop.f32.mrf.mxu0
        %v539 = vadd.f32 %v449, %v538
        %v540 = vpop.f32.mrf.mxu0
        %v541 = vadd.f32 %v449, %v540
        %542 = vmatmul.bf16.gmra.mxu0 %v430
        %v543 = vpop.f32.mrf.mxu0
        %v544 = vadd.f32 %v449, %v543
        %v545 = vpop.f32.mrf.mxu0
        %v546 = vadd.f32 %v449, %v545
        %547 = vdwg.mxu0
        %v548 = vtanh.pop %v509
        %v549 = vtanh.pop %v511
        %v550 = vtanh.pop %v514
        %v551 = vtanh.pop %v516
        %v552 = vtanh.pop %v519
        %v553 = vtanh.pop %v521
        %v554 = vtanh.pop %v524
        %v555 = vtanh.pop %v526
        %v556 = vtanh.pop %v529
        %v557 = vtanh.pop %v531
        %v558 = vtanh.pop %v534
        %v559 = vtanh.pop %v536
        %v560 = vtanh.pop %v539
        %v561 = vtanh.pop %v541
        %v562 = vtanh.pop %v544
        %v563 = vtanh.pop %v546
        %564 = vst [vmem:[%s218] sm:$0xff] %v548
        %565 = vst [vmem:[%s218 + $0x8] sm:$0xff] %v549
        %566 = vst [vmem:[%s218 + $0x10] sm:$0xff] %v550
        %567 = vst [vmem:[%s218 + $0x18] sm:$0xff] %v551
        %568 = vst [vmem:[%s218 + $0x20] sm:$0xff] %v552
        %569 = vst [vmem:[%s218 + $0x28] sm:$0xff] %v553
        %570 = vst [vmem:[%s218 + $0x30] sm:$0xff] %v554
        %571 = vst [vmem:[%s218 + $0x38] sm:$0xff] %v555
        %572 = vst [vmem:[%s218 + $0x40] sm:$0xff] %v556
        %573 = vst [vmem:[%s218 + $0x48] sm:$0xff] %v557
        %574 = vst [vmem:[%s218 + $0x50] sm:$0xff] %v558
        %575 = vst [vmem:[%s218 + $0x58] sm:$0xff] %v559
        %576 = vst [vmem:[%s218 + $0x60] sm:$0xff] %v560
        %577 = vst [vmem:[%s218 + $0x68] sm:$0xff] %v561
        %578 = vst [vmem:[%s218 + $0x70] sm:$0xff] %v562
        %579 = vst [vmem:[%s218 + $0x78] sm:$0xff] %v563
        %s580 = sand.u32 %s137, 1
        %s581 = scalar_lea.sflag [#allocation3], %s580
        %s582 = sand.u32 %s137, 1
        %s583 = smul.addr %s582, 128
        %s584 = scalar_lea.vmem [#allocation2], %s583
        // Predicated region
        $region41: #{mlps_forward.1} parent=39 // pred_check
          %p585 = pneg %p147
        $region42: #{mlps_forward.1} parent=39 // pred_check_branch
          %587 = sbr.rel (%p585) target = $region44
        $region43: #{mlps_forward.1} parent=39 // pred_region
          %s588 = smul.u32 16, %s19
          %590 = vsyncadd %s581, 0
          %s591 = smul.addr %s588, 8
          %s592 = scalar_lea.hbm %s5, %s591
          %s593 = sshll.u32 %s584, 4
          %s594 = int_to_ptr.vmem [resolvable:$true] %s593
          %s595 = sshll.u32 %s592, 4
          %s596 = int_to_ptr.hbm [resolvable:$true] %s595
          %601 = dma.vmem_to_hbm [thread:$0]  %s594, 2048, %s596, %s581, 128, 128, 8
        $region44: #{mlps_forward.1} parent=39 // pred_fallthru
          _
      $region40: #{mlps_forward.1} parent=5 // pred_fallthru
        _
      %p602 = scmp.le.s32.totalorder 2, %s14
      // Predicated region
      $region45: #{mlps_forward.1} parent=5 // pred_check
        %p603 = pneg %p602
      $region46: #{mlps_forward.1} parent=5 // pred_check_branch
        %605 = sbr.rel (%p603) target = $region48
      $region47: #{mlps_forward.1} parent=5 // pred_region
        %s606 = ssub.s32 %s14, 2
        // Predicated region
        $region49: #{mlps_forward.1} parent=47 // pred_check
          %p607 = pneg %p153
        $region50: #{mlps_forward.1} parent=47 // pred_check_branch
          %609 = sbr.rel (%p607) target = $region52
        $region51: #{mlps_forward.1} parent=47 // pred_region
          %s610 = sand.u32 %s138, 1
          %s611 = scalar_lea.sflag [#allocation3], %s610
          %s612 = sand.u32 %s138, 1
          %s613 = smul.addr %s612, 128
          %s614 = scalar_lea.vmem [#allocation2], %s613
          %616 = dma.done %s611, 2048
        $region52: #{mlps_forward.1} parent=47 // pred_fallthru
          _
      $region48: #{mlps_forward.1} parent=5 // pred_fallthru
        _
    $region6: #{mlps_forward.1} parent=1 // loop_footer
      %s18 = sadd.s32 1, %s14
    $region7: #{mlps_forward.1} parent=1 // loop_footer_branch
      %13 = sbr.rel target = $region3
    $region8: #{mlps_forward.1} parent=1 // loop_exit
      _
    %617 = vsyncpa [#allocation3], 1
    %s618 = scalar_lea.sflag [#allocation3], 1
    %619 = vsyncpa %s618, 1

</llo_original>
